<compile_context>
chip_gen: v5e
topology: v5e:2x2
jax: 0.10.0
libtpu: 0.0.40
codegen_flags: <defaults>
</compile_context>

<pallas_src>
import functools
import math

import jax
import jax.numpy as jnp
from jax.experimental import pallas as pl
from jax.experimental.pallas import tpu as pltpu

GAMMA = 0.2


def _focal_loss_kernel(logits_ref, target_ref, partial_ref, *, hw_k, tile, k, gamma):
    j = pl.program_id(1)
    rows = logits_ref.shape[1]                       # rows = C * k, row = class*k + parity

    x = logits_ref[0].astype(jnp.float32)            # (rows, tile)

    # Ragged-tail lane mask. Padded-lane contents are unspecified but never cross lanes
    # before the final (masked) block sum, so only the loss needs masking.
    lane = jax.lax.broadcasted_iota(jnp.int32, (1, tile), 1)
    valid = (j * tile + lane) < hw_k                 # (1, tile)

    # sigmoid via tanh: a single EUP transcendental per element.
    s = 0.5 * jnp.tanh(0.5 * x) + 0.5                # (rows, tile), bounded in (0, 1)
    e = jnp.exp(s)                                   # (rows, tile)

    row = jax.lax.broadcasted_iota(jnp.int32, (rows, tile), 0)

    if k == 1:
        tgt = target_ref[0]                          # (1, tile) int32
        sumexp = jnp.sum(e, axis=0, keepdims=True)
        s_t = jnp.sum(jnp.where(row == tgt, s, 0.0), axis=0, keepdims=True)
    else:
        par = jnp.bitwise_and(row, k - 1)            # parity of each row (k is a power of 2)
        se_parts, st_parts = [], []
        for p in range(k):                           # small static python loop
            tgt_p = target_ref[0, p:p + 1, :]        # (1, tile) int32
            # row index of the target class inside parity group p is target*k + p.
            hit_p = row == (tgt_p * k + p)
            st_parts.append(jnp.sum(jnp.where(hit_p, s, 0.0), axis=0, keepdims=True))
            se_parts.append(jnp.sum(jnp.where(par == p, e, 0.0), axis=0, keepdims=True))
        s_t = jnp.concatenate(st_parts, axis=0)      # (k, tile)
        sumexp = jnp.concatenate(se_parts, axis=0)   # (k, tile)

    log_pt = s_t - jnp.log(sumexp)                   # log softmax(sigmoid(x))[target]
    pt = jnp.exp(log_pt)
    focal = jnp.exp(gamma * jnp.log(1.0 - pt))       # (1 - pt) ** gamma, explicit EUP form
    loss = -focal * log_pt                           # (k, tile)
    loss = jnp.where(valid, loss, 0.0)

    block_sum = jnp.sum(loss)
    # Lane-broadcast partial sum: trivial epilogue, wrapper reads lane 0 of each block.
    partial_ref[...] = jnp.full((1, 1, 1, 128), block_sum, dtype=jnp.float32)


def _padded_bytes_per_col(rows, itemsize):
    """VMEM bytes per lane-column, including sublane padding to the native tile."""
    native_sub = max(1, 32 // itemsize)              # 8 (f32) / 16 (bf16) / 32 (int8)
    return -(-rows // native_sub) * native_sub * itemsize


def _choose_tile(hw_k, rows, k, logit_itemsize, step_bytes=4 << 20):
    """Lane tile (multiple of 128) sized so padded logits+target bytes/step ~= step_bytes.

    Double-buffered working set is therefore ~2*step_bytes (+ small scratch): fits every
    chip, including v7x's 64 MiB VMEM, and large enough to amortize per-step overhead.
    """
    per_col = _padded_bytes_per_col(rows, logit_itemsize) + _padded_bytes_per_col(k, 4)
    t = max(128, (step_bytes // per_col) // 128 * 128)
    hw_pad = -(-hw_k // 128) * 128
    return min(t, hw_pad)


def cross_entropy_focal_loss(logits, target, *, gamma=GAMMA, tile_hw=None):
    """logits: (N, C, *spatial) or (M, C); target: (N, *spatial) or (M,). Scalar mean loss."""
    if logits.ndim > 2:
        N, C = logits.shape[0], logits.shape[1]
        hw = math.prod(logits.shape[2:])
        logits2 = logits.reshape(N, C, hw)           # pure view of NCHW, no HBM movement
    else:
        # 2-D fallback: rows must move onto the lane axis (real HBM copy; rare path).
        M, C = logits.shape
        N, hw = 1, M
        logits2 = logits.T.reshape(1, C, hw)
    # Targets: int32 (no-op when already int32; smaller int dtypes could be fed directly
    # on bandwidth-bound v5e if produced upstream).
    target2 = target.reshape(N, hw).astype(jnp.int32)

    itemsize = jnp.dtype(logits.dtype).itemsize
    # Sublane packing factor: fold k spatial columns into the class axis so C*k fills the
    # native sublane count (8 for f32, 16 for bf16).  Must be a power of two dividing hw.
    k = max(1, (32 // itemsize) // max(C, 1))
    if k > 1:
        k = 1 << (k.bit_length() - 1)
        while k > 1 and hw % k:
            k //= 2
    rows = C * k
    hw_k = hw // k
    logits3 = logits2.reshape(N, rows, hw_k)          # still a pure view of the (C, hw) rows
    tgt3 = target2.reshape(N, k, hw_k)

    if tile_hw is None:
        tile_hw = _choose_tile(hw_k, rows, k, itemsize)
        # Keep at least two grid steps when N == 1 so both v7x TensorCores get work.
        if N == 1 and hw_k > 128 and pl.cdiv(hw_k, tile_hw) < 2:
            tile_hw = max(128, -(-(hw_k // 2) // 128) * 128)
    grid_j = pl.cdiv(hw_k, tile_hw)
    grid = (N, grid_j)

    kernel = functools.partial(_focal_loss_kernel, hw_k=hw_k, tile=tile_hw, k=k, gamma=gamma)

    partials = pl.pallas_call(
        kernel,
        out_shape=jax.ShapeDtypeStruct((N, grid_j, 1, 128), jnp.float32),
        grid_spec=pltpu.PrefetchScalarGridSpec(
            num_scalar_prefetch=0,
            grid=grid,
            in_specs=[
                pl.BlockSpec((1, rows, tile_hw), lambda n, j: (n, 0, j)),
                pl.BlockSpec((1, k, tile_hw), lambda n, j: (n, 0, j)),
            ],
            out_specs=pl.BlockSpec((1, 1, 1, 128), lambda n, j: (n, j, 0, 0)),
        ),
        compiler_params=pltpu.CompilerParams(
            dimension_semantics=("parallel", "parallel"),
            vmem_limit_bytes=32 << 20,
        ),
    )(logits3, tgt3)

    # reduction='mean'; every lane of a partial block holds the same block sum.
    return jnp.sum(partials[:, :, 0, 0]) / (N * hw)


def _reference(logits, target):
    # Pure-JAX reference matching the PyTorch module (gamma=0.2, alpha=None, mean).
    if logits.ndim > 2:
        N, C = logits.shape[0], logits.shape[1]
        flat = logits.reshape(N, C, -1).transpose(0, 2, 1).reshape(-1, C)
    else:
        flat = logits
    tgt = target.reshape(-1)
    s = jax.nn.sigmoid(flat.astype(jnp.float32))
    p = jax.nn.softmax(s, axis=1)
    pt = jnp.take_along_axis(p, tgt[:, None], axis=1)[:, 0]
    log_pt = jnp.log(pt)
    loss = -1.0 * (1.0 - pt) ** GAMMA * log_pt
    return jnp.mean(loss)


if __name__ == "__main__":
    key = jax.random.PRNGKey(0)
    k1, k2 = jax.random.split(key)

    N, C, H, W = 2, 4, 16, 16
    logits = jax.random.normal(k1, (N, C, H, W), dtype=jnp.float32)
    target = jax.random.randint(k2, (N, H, W), 0, C, dtype=jnp.int32)

    out = cross_entropy_focal_loss(logits, target)
    out = jax.block_until_ready(out)

    ref = _reference(logits, target)
    assert jnp.allclose(out, ref, atol=1e-5, rtol=1e-5), (out, ref)

    print("KERNEL_OK")
</pallas_src>

<mosaic_0001>
module attributes {stable_mosaic.version = 11 : i64} {
  func.func @_focal_loss_kernel(%arg0: i32, %arg1: i32, %arg2: memref<1x8x128xf32, #tpu.memory_space<vmem>>, %arg3: memref<1x2x128xi32, #tpu.memory_space<vmem>>, %arg4: memref<1x1x1x128xf32, #tpu.memory_space<vmem>>) attributes {dimension_semantics = [#tpu.dimension_semantics<parallel>, #tpu.dimension_semantics<parallel>], iteration_bounds = array<i64: 2, 1>, scalar_prefetch = 0 : i64, scratch_operands = 0 : i64, tpu.core_type = #tpu.core_type<tc>, window_params = [{transform_indices = @transform_0, window_bounds = array<i64: 1, 8, 128>}, {transform_indices = @transform_1, window_bounds = array<i64: 1, 2, 128>}, {transform_indices = @transform_2, window_bounds = array<i64: 1, 1, 1, 128>}]} {
    %c0 = arith.constant 0 : index
    %c0_0 = arith.constant 0 : index
    %c0_1 = arith.constant 0 : index
    %0 = vector.load %arg2[%c0, %c0_0, %c0_1] : memref<1x8x128xf32, #tpu.memory_space<vmem>>, vector<1x8x128xf32>
    %1 = vector.shape_cast %0 : vector<1x8x128xf32> to vector<8x128xf32>
    %2 = tpu.iota {dimensions = array<i32: 1>} : vector<1x128xi32>
    %c128_i32 = arith.constant 128 : i32
    %3 = arith.muli %arg1, %c128_i32 : i32
    %4 = vector.broadcast %3 : i32 to vector<1x128xi32>
    %5 = arith.addi %4, %2 : vector<1x128xi32>
    %c128_i32_2 = arith.constant 128 : i32
    %6 = vector.broadcast %c128_i32_2 : i32 to vector<1x128xi32>
    %7 = arith.cmpi slt, %5, %6 : vector<1x128xi32>
    %cst = arith.constant 5.000000e-01 : f32
    %8 = vector.broadcast %cst : f32 to vector<8x128xf32>
    %9 = arith.mulf %8, %1 : vector<8x128xf32>
    %10 = math.tanh %9 : vector<8x128xf32>
    %cst_3 = arith.constant 5.000000e-01 : f32
    %11 = vector.broadcast %cst_3 : f32 to vector<8x128xf32>
    %12 = arith.mulf %11, %10 : vector<8x128xf32>
    %cst_4 = arith.constant 5.000000e-01 : f32
    %13 = vector.broadcast %cst_4 : f32 to vector<8x128xf32>
    %14 = arith.addf %12, %13 : vector<8x128xf32>
    %15 = math.exp %14 : vector<8x128xf32>
    %16 = tpu.iota {dimensions = array<i32: 0>} : vector<8x128xi32>
    %c1_i32 = arith.constant 1 : i32
    %17 = vector.broadcast %c1_i32 : i32 to vector<8x128xi32>
    %18 = arith.andi %16, %17 : vector<8x128xi32>
    %c0_5 = arith.constant 0 : index
    %c0_6 = arith.constant 0 : index
    %c0_7 = arith.constant 0 : index
    %19 = vector.load %arg3[%c0_5, %c0_6, %c0_7] : memref<1x2x128xi32, #tpu.memory_space<vmem>>, vector<1x1x128xi32>
    %20 = vector.shape_cast %19 : vector<1x1x128xi32> to vector<1x128xi32>
    %c2_i32 = arith.constant 2 : i32
    %21 = vector.broadcast %c2_i32 : i32 to vector<1x128xi32>
    %22 = arith.muli %20, %21 : vector<1x128xi32>
    %c0_i32 = arith.constant 0 : i32
    %23 = vector.broadcast %c0_i32 : i32 to vector<1x128xi32>
    %24 = arith.addi %22, %23 : vector<1x128xi32>
    %25 = vector.broadcast %24 : vector<1x128xi32> to vector<8x128xi32>
    %26 = arith.cmpi eq, %16, %25 : vector<8x128xi32>
    %cst_8 = arith.constant 0.000000e+00 : f32
    %27 = vector.broadcast %cst_8 : f32 to vector<8x128xf32>
    %28 = arith.select %26, %14, %27 : vector<8x128xi1>, vector<8x128xf32>
    %cst_9 = arith.constant dense<0.000000e+00> : vector<128xf32>
    %29 = vector.multi_reduction <add>, %28, %cst_9 [0] : vector<8x128xf32> to vector<128xf32>
    %30 = vector.shape_cast %29 : vector<128xf32> to vector<1x128xf32>
    %c0_i32_10 = arith.constant 0 : i32
    %31 = vector.broadcast %c0_i32_10 : i32 to vector<8x128xi32>
    %32 = arith.cmpi eq, %18, %31 : vector<8x128xi32>
    %cst_11 = arith.constant 0.000000e+00 : f32
    %33 = vector.broadcast %cst_11 : f32 to vector<8x128xf32>
    %34 = arith.select %32, %15, %33 : vector<8x128xi1>, vector<8x128xf32>
    %cst_12 = arith.constant dense<0.000000e+00> : vector<128xf32>
    %35 = vector.multi_reduction <add>, %34, %cst_12 [0] : vector<8x128xf32> to vector<128xf32>
    %36 = vector.shape_cast %35 : vector<128xf32> to vector<1x128xf32>
    %c0_13 = arith.constant 0 : index
    %c1 = arith.constant 1 : index
    %c0_14 = arith.constant 0 : index
    %37 = vector.load %arg3[%c0_13, %c1, %c0_14] : memref<1x2x128xi32, #tpu.memory_space<vmem>>, vector<1x1x128xi32>
    %38 = vector.shape_cast %37 : vector<1x1x128xi32> to vector<1x128xi32>
    %c2_i32_15 = arith.constant 2 : i32
    %39 = vector.broadcast %c2_i32_15 : i32 to vector<1x128xi32>
    %40 = arith.muli %38, %39 : vector<1x128xi32>
    %c1_i32_16 = arith.constant 1 : i32
    %41 = vector.broadcast %c1_i32_16 : i32 to vector<1x128xi32>
    %42 = arith.addi %40, %41 : vector<1x128xi32>
    %43 = vector.broadcast %42 : vector<1x128xi32> to vector<8x128xi32>
    %44 = arith.cmpi eq, %16, %43 : vector<8x128xi32>
    %cst_17 = arith.constant 0.000000e+00 : f32
    %45 = vector.broadcast %cst_17 : f32 to vector<8x128xf32>
    %46 = arith.select %44, %14, %45 : vector<8x128xi1>, vector<8x128xf32>
    %cst_18 = arith.constant dense<0.000000e+00> : vector<128xf32>
    %47 = vector.multi_reduction <add>, %46, %cst_18 [0] : vector<8x128xf32> to vector<128xf32>
    %48 = vector.shape_cast %47 : vector<128xf32> to vector<1x128xf32>
    %c1_i32_19 = arith.constant 1 : i32
    %49 = vector.broadcast %c1_i32_19 : i32 to vector<8x128xi32>
    %50 = arith.cmpi eq, %18, %49 : vector<8x128xi32>
    %cst_20 = arith.constant 0.000000e+00 : f32
    %51 = vector.broadcast %cst_20 : f32 to vector<8x128xf32>
    %52 = arith.select %50, %15, %51 : vector<8x128xi1>, vector<8x128xf32>
    %cst_21 = arith.constant dense<0.000000e+00> : vector<128xf32>
    %53 = vector.multi_reduction <add>, %52, %cst_21 [0] : vector<8x128xf32> to vector<128xf32>
    %54 = vector.shape_cast %53 : vector<128xf32> to vector<1x128xf32>
    %55 = tpu.concatenate %30, %48 in 0 : vector<1x128xf32>, vector<1x128xf32> -> vector<2x128xf32>
    %56 = tpu.concatenate %36, %54 in 0 : vector<1x128xf32>, vector<1x128xf32> -> vector<2x128xf32>
    %57 = math.log %56 : vector<2x128xf32>
    %58 = arith.subf %55, %57 : vector<2x128xf32>
    %59 = math.exp %58 : vector<2x128xf32>
    %cst_22 = arith.constant 1.000000e+00 : f32
    %60 = vector.broadcast %cst_22 : f32 to vector<2x128xf32>
    %61 = arith.subf %60, %59 : vector<2x128xf32>
    %62 = math.log %61 : vector<2x128xf32>
    %cst_23 = arith.constant 2.000000e-01 : f32
    %63 = vector.broadcast %cst_23 : f32 to vector<2x128xf32>
    %64 = arith.mulf %63, %62 : vector<2x128xf32>
    %65 = math.exp %64 : vector<2x128xf32>
    %cst_24 = arith.constant 0.000000e+00 : f32
    %66 = vector.broadcast %cst_24 : f32 to vector<2x128xf32>
    %67 = arith.subf %66, %65 : vector<2x128xf32>
    %68 = arith.mulf %67, %58 : vector<2x128xf32>
    %cst_25 = arith.constant 0.000000e+00 : f32
    %69 = vector.shape_cast %7 : vector<1x128xi1> to vector<1x128xi1>
    %70 = vector.broadcast %69 : vector<1x128xi1> to vector<2x128xi1>
    %71 = vector.broadcast %cst_25 : f32 to vector<2x128xf32>
    %72 = arith.select %70, %68, %71 : vector<2x128xi1>, vector<2x128xf32>
    %73 = vector.shape_cast %72 : vector<2x128xf32> to vector<1x2x128xf32>
    %cst_26 = arith.constant dense<0.000000e+00> : vector<1xf32>
    %74 = vector.multi_reduction <add>, %73, %cst_26 [1, 2] : vector<1x2x128xf32> to vector<1xf32>
    %75 = vector.shape_cast %74 : vector<1xf32> to vector<1x1x1xf32>
    %76 = vector.extract %75[0, 0, 0] : f32 from vector<1x1x1xf32>
    %77 = vector.broadcast %76 : f32 to vector<1x1x1x128xf32>
    %c0_27 = arith.constant 0 : index
    %c0_28 = arith.constant 0 : index
    %c0_29 = arith.constant 0 : index
    %c0_30 = arith.constant 0 : index
    %78 = vector.load %arg4[%c0_27, %c0_28, %c0_29, %c0_30] : memref<1x1x1x128xf32, #tpu.memory_space<vmem>>, vector<1x1x1x128xf32>
    tpu.vector_store %arg4[%c0_27, %c0_28, %c0_29, %c0_30], %77 {strides = array<i32>} : memref<1x1x1x128xf32, #tpu.memory_space<vmem>>, vector<1x1x1x128xf32>,
    return
  }
  func.func @transform_0(%arg0: i32, %arg1: i32) -> (i32, i32, i32) {
    %c0_i32 = arith.constant 0 : i32
    %c0_i32_0 = arith.constant 0 : i32
    return %arg0, %c0_i32, %arg1 : i32, i32, i32
  }
  func.func @transform_1(%arg0: i32, %arg1: i32) -> (i32, i32, i32) {
    %c0_i32 = arith.constant 0 : i32
    %c0_i32_0 = arith.constant 0 : i32
    return %arg0, %c0_i32, %arg1 : i32, i32, i32
  }
  func.func @transform_2(%arg0: i32, %arg1: i32) -> (i32, i32, i32, i32) {
    %c0_i32 = arith.constant 0 : i32
    %c0_i32_0 = arith.constant 0 : i32
    %c0_i32_1 = arith.constant 0 : i32
    return %arg0, %arg1, %c0_i32, %c0_i32_0 : i32, i32, i32, i32
  }
}

</mosaic_0001>

<llo_original>
// kernel: tpu_custom_call.1
$region0: #{tpu_custom_call.1}
  #allocation0 [shape = 'u32[]', space=smem, size = 0x4, offset = 0x4, fixed_abs, tag = 'smem constant byte address 0x4 - core index']
  #allocation1 [shape = 'u32[72,128]{1,0:T(1,128)}', space=vmem, size = 0x9000, scoped, tag = 'internal scratch']
  %s0 = inlined_call_operand.hbm [shape: f32[2,8,128], index: 0, kind: input, shape index: {}]
  %s1 = inlined_call_operand.hbm [shape: s32[2,2,128], index: 1, kind: input, shape index: {}]
  %s2 = inlined_call_operand.hbm [shape: f32[2,1,1,128], index: 2, kind: output, shape index: {}]
  %s3 = sld [smem:[#allocation0]]
  $region49: #{tpu_custom_call.1} parent=0
    _
  %s5 = ssub.s32 1, %s3
  %s6 = scalar_select 0, %s5, %s3
  $region1: #{tpu_custom_call.1} parent=0
    #allocation2 [shape = 'u8[8192]{0}', space=vmem, size = 0x2000, scoped, tag = 'input window, operand 0']
    #allocation3 [shape = 's32[2]{0}', space=sflag, size = 0x8, scoped, tag = 'scoped memory for tpu_custom_call.1']
    #allocation4 [shape = 's32[2]{0}', space=sflag, size = 0x8, scoped, tag = 'scoped memory for tpu_custom_call.1']
    #allocation5 [shape = 'u8[2048]{0}', space=vmem, size = 0x800, scoped, tag = 'input window, operand 1']
    #allocation6 [shape = 's32[2]{0}', space=sflag, size = 0x8, scoped, tag = 'scoped memory for tpu_custom_call.1']
    #allocation7 [shape = 'u8[1024]{0}', space=vmem, size = 0x400, scoped, tag = 'output window, operand 0']
    %7 = vsyncpa [#allocation3], 0
    %s8 = scalar_lea.sflag [#allocation3], 1
    %9 = vsyncpa %s8, 0
    %10 = vsyncpa [#allocation6], 0
    %s11 = scalar_lea.sflag [#allocation6], 1
    %12 = vsyncpa %s11, 0
    %13 = vsyncpa [#allocation4], 0
    %s14 = scalar_lea.sflag [#allocation4], 1
    %15 = vsyncpa %s14, 0
    loop: start=0, step=1, limit=4
    $region2: #{tpu_custom_call.1} parent=1 // loop_pre_header
      _
    $region3: #{tpu_custom_call.1} parent=1 // loop_header
      %s17 = sphi 0, %s21
      %p18 = scmp.ge.s32.totalorder %s17, 4
      %s24 = sphi 0, %s36
      %s25 = sphi 0, %s32
      %s26 = sphi 0, %s24
      %s27 = sphi 0, %s25
      %s28 = sphi 0, %s26
      %s29 = sphi 0, %s27
      %s41 = sphi 0, %s43
      %s44 = sphi 0, %s41
      %s45 = sphi 0, %s44
      %s61 = sphi 0, %s45
      %s69 = sphi 0, %s71
      %s72 = sphi 0, %s69
      %s73 = sphi 0, %s72
      %s89 = sphi 0, %s73
      %s97 = sphi 0, %s99
      %s100 = sphi 0, %s97
      %s101 = sphi 0, %s100
      %s117 = sphi 0, %s101
    $region4: #{tpu_custom_call.1} parent=1 // loop_header_branch
      %20 = sbr.rel (%p18) target = $region8
    $region5: #{tpu_custom_call.1} parent=1 // loop_body
      %s22 = ssub.s32 %s17, 1
      %s23 = ssub.s32 %s17, 2
      %s30 = sadd.s32 1, %s25
      %p31 = scmp.ge.s32.totalorder %s30, 1
      %s32 = scalar_select %p31, 0, %s30
      %s33 = sadd.s32 1, %s24
      %s34 = scalar_select %p31, %s33, %s24
      %p35 = scmp.ge.s32.totalorder %s34, 2
      %s36 = scalar_select %p35, 0, %s34
      %s37 = ssub.s32 %s24, %s36
      %s38 = ssub.s32 %s25, %s32
      %s39 = sor.u32 %s37, %s38
      %p40 = scmp.eq.s32.totalorder %s39, 0
      %s42 = sadd.s32 %s41, 1
      %s43 = scalar_select %p40, %s41, %s42
      %p46 = pneg %p40
      %p47 = scmp.eq.s32.totalorder %s17, 1
      %p48 = por %p46, %p47
      %p49 = scmp.ne.s32.totalorder %s41, %s44
      %p50 = scmp.eq.s32.totalorder %s17, 0
      %p51 = por %p49, %p50
      %p52 = scmp.ne.s32.totalorder %s41, %s44
      %p53 = scmp.eq.s32.totalorder %s22, 1
      %p54 = por %p52, %p53
      %p55 = scmp.ne.s32.totalorder %s44, %s45
      %p56 = scmp.eq.s32.totalorder %s22, 0
      %p57 = por %p55, %p56
      %p58 = scmp.ne.s32.totalorder %s44, %s45
      %p59 = scmp.eq.s32.totalorder %s23, 1
      %p60 = por %p58, %p59
      %p62 = scmp.ne.s32.totalorder %s45, %s61
      %p63 = scmp.eq.s32.totalorder %s23, 0
      %p64 = por %p62, %p63
      %s65 = ssub.s32 %s24, %s36
      %s66 = ssub.s32 %s25, %s32
      %s67 = sor.u32 %s65, %s66
      %p68 = scmp.eq.s32.totalorder %s67, 0
      %s70 = sadd.s32 %s69, 1
      %s71 = scalar_select %p68, %s69, %s70
      %p74 = pneg %p68
      %p75 = scmp.eq.s32.totalorder %s17, 1
      %p76 = por %p74, %p75
      %p77 = scmp.ne.s32.totalorder %s69, %s72
      %p78 = scmp.eq.s32.totalorder %s17, 0
      %p79 = por %p77, %p78
      %p80 = scmp.ne.s32.totalorder %s69, %s72
      %p81 = scmp.eq.s32.totalorder %s22, 1
      %p82 = por %p80, %p81
      %p83 = scmp.ne.s32.totalorder %s72, %s73
      %p84 = scmp.eq.s32.totalorder %s22, 0
      %p85 = por %p83, %p84
      %p86 = scmp.ne.s32.totalorder %s72, %s73
      %p87 = scmp.eq.s32.totalorder %s23, 1
      %p88 = por %p86, %p87
      %p90 = scmp.ne.s32.totalorder %s73, %s89
      %p91 = scmp.eq.s32.totalorder %s23, 0
      %p92 = por %p90, %p91
      %s93 = ssub.s32 %s24, %s36
      %s94 = ssub.s32 %s25, %s32
      %s95 = sor.u32 %s93, %s94
      %p96 = scmp.eq.s32.totalorder %s95, 0
      %s98 = sadd.s32 %s97, 1
      %s99 = scalar_select %p96, %s97, %s98
      %p102 = pneg %p96
      %p103 = scmp.eq.s32.totalorder %s17, 1
      %p104 = por %p102, %p103
      %p105 = scmp.ne.s32.totalorder %s97, %s100
      %p106 = scmp.eq.s32.totalorder %s17, 0
      %p107 = por %p105, %p106
      %p108 = scmp.ne.s32.totalorder %s97, %s100
      %p109 = scmp.eq.s32.totalorder %s22, 1
      %p110 = por %p108, %p109
      %p111 = scmp.ne.s32.totalorder %s100, %s101
      %p112 = scmp.eq.s32.totalorder %s22, 0
      %p113 = por %p111, %p112
      %p114 = scmp.ne.s32.totalorder %s100, %s101
      %p115 = scmp.eq.s32.totalorder %s23, 1
      %p116 = por %p114, %p115
      %p118 = scmp.ne.s32.totalorder %s101, %s117
      %p119 = scmp.eq.s32.totalorder %s23, 0
      %p120 = por %p118, %p119
      %p121 = scmp.le.s32.totalorder 1, %s17
      %p122 = scmp.lt.s32.totalorder %s17, 3
      %p123 = pnand %p121, %p122
      %p124 = pneg %p123
      // Predicated region
      $region9: #{tpu_custom_call.1} parent=5 // pred_check
        _
      $region10: #{tpu_custom_call.1} parent=5 // pred_check_branch
        %126 = sbr.rel (%p123) target = $region12
      $region11: #{tpu_custom_call.1} parent=5 // pred_region
        %s127 = ssub.s32 %s17, 1
      $region12: #{tpu_custom_call.1} parent=5 // pred_fallthru
        _
      %p128 = scmp.lt.s32.totalorder %s17, 2
      // Predicated region
      $region13: #{tpu_custom_call.1} parent=5 // pred_check
        %p129 = pneg %p128
      $region14: #{tpu_custom_call.1} parent=5 // pred_check_branch
        %131 = sbr.rel (%p129) target = $region16
      $region15: #{tpu_custom_call.1} parent=5 // pred_region
        // Predicated region
        $region17: #{tpu_custom_call.1} parent=15 // pred_check
          %p132 = pneg %p51
        $region18: #{tpu_custom_call.1} parent=15 // pred_check_branch
          %134 = sbr.rel (%p132) target = $region20
        $region19: #{tpu_custom_call.1} parent=15 // pred_region
          %s135 = sand.u32 %s41, 1
          %s136 = scalar_lea.sflag [#allocation3], %s135
          %s137 = sand.u32 %s41, 1
          %s138 = smul.addr %s137, 8
          %s139 = scalar_lea.vmem [#allocation2], %s138
          %141 = vsyncadd %s136, 0
          %s142 = sadd.s32 %s25, %s24
          %s143 = smul.addr %s142, 8
          %s144 = scalar_lea.hbm %s0, %s143
          %s146 = sshll.u32 %s144, 4
          %s147 = int_to_ptr.hbm [resolvable:$true] %s146
          %s148 = sshll.u32 %s139, 4
          %s149 = int_to_ptr.vmem [resolvable:$true] %s148
          %151 = dma.hbm_to_vmem [thread:$0]  %s147, 128, %s149, %s136
        $region20: #{tpu_custom_call.1} parent=15 // pred_fallthru
          _
        // Predicated region
        $region21: #{tpu_custom_call.1} parent=15 // pred_check
          %p152 = pneg %p79
        $region22: #{tpu_custom_call.1} parent=15 // pred_check_branch
          %154 = sbr.rel (%p152) target = $region24
        $region23: #{tpu_custom_call.1} parent=15 // pred_region
          %s155 = sand.u32 %s69, 1
          %s156 = scalar_lea.sflag [#allocation6], %s155
          %s157 = sand.u32 %s69, 1
          %s158 = smul.addr %s157, 2
          %s159 = scalar_lea.vmem [#allocation5], %s158
          %161 = vsyncadd %s156, 0
          %s162 = sadd.s32 %s25, %s24
          %s163 = smul.addr %s162, 2
          %s164 = scalar_lea.hbm %s1, %s163
          %s166 = sshll.u32 %s164, 4
          %s167 = int_to_ptr.hbm [resolvable:$true] %s166
          %s168 = sshll.u32 %s159, 4
          %s169 = int_to_ptr.vmem [resolvable:$true] %s168
          %171 = dma.hbm_to_vmem [thread:$0]  %s167, 32, %s169, %s156
        $region24: #{tpu_custom_call.1} parent=15 // pred_fallthru
          _
      $region16: #{tpu_custom_call.1} parent=5 // pred_fallthru
        _
      %p172 = scmp.le.s32.totalorder 1, %s17
      %p173 = scmp.lt.s32.totalorder %s17, 3
      %p174 = pnand %p172, %p173
      %p175 = pneg %p174
      // Predicated region
      $region25: #{tpu_custom_call.1} parent=5 // pred_check
        _
      $region26: #{tpu_custom_call.1} parent=5 // pred_check_branch
        %177 = sbr.rel (%p174) target = $region28
      $region27: #{tpu_custom_call.1} parent=5 // pred_region
        %s178 = ssub.s32 %s17, 1
        %s179 = sand.u32 %s44, 1
        %s180 = scalar_lea.sflag [#allocation3], %s179
        %s181 = sand.u32 %s44, 1
        %s182 = smul.addr %s181, 8
        %s183 = scalar_lea.vmem [#allocation2], %s182
        // Predicated region
        $region29: #{tpu_custom_call.1} parent=27 // pred_check
          %p184 = pneg %p57
        $region30: #{tpu_custom_call.1} parent=27 // pred_check_branch
          %186 = sbr.rel (%p184) target = $region32
        $region31: #{tpu_custom_call.1} parent=27 // pred_region
          %188 = dma.done %s180, 128
        $region32: #{tpu_custom_call.1} parent=27 // pred_fallthru
          _
        %s189 = sand.u32 %s72, 1
        %s190 = scalar_lea.sflag [#allocation6], %s189
        %s191 = sand.u32 %s72, 1
        %s192 = smul.addr %s191, 2
        %s193 = scalar_lea.vmem [#allocation5], %s192
        // Predicated region
        $region33: #{tpu_custom_call.1} parent=27 // pred_check
          %p194 = pneg %p85
        $region34: #{tpu_custom_call.1} parent=27 // pred_check_branch
          %196 = sbr.rel (%p194) target = $region36
        $region35: #{tpu_custom_call.1} parent=27 // pred_region
          %198 = dma.done %s190, 32
        $region36: #{tpu_custom_call.1} parent=27 // pred_fallthru
          _
        %s199 = sand.u32 %s44, 1
        %s200 = scalar_lea.sflag [#allocation3], %s199
        %s201 = sand.u32 %s44, 1
        %s202 = smul.addr %s201, 8
        %s203 = scalar_lea.vmem [#allocation2], %s202
        %p204 = pneg %p57
        %p205 = pneg %p54
        %s206 = sand.u32 %s72, 1
        %s207 = scalar_lea.sflag [#allocation6], %s206
        %s208 = sand.u32 %s72, 1
        %s209 = smul.addr %s208, 2
        %s210 = scalar_lea.vmem [#allocation5], %s209
        %p211 = pneg %p85
        %p212 = pneg %p82
        %p213 = pneg %p113
        %p214 = pneg %p110
        %s215 = sand.u32 %s100, 1
        %s216 = scalar_lea.sflag [#allocation4], %s215
        %s217 = sand.u32 %s100, 1
        %s218 = scalar_lea.vmem [#allocation7], %s217
        %v219 = vld [vmem:[%s183] sm:$0xff]
        %v220 = vlaneseq
        %v221 = vand.u32 %v220, 127
        %s222 = smul.u32 %s27, 128
        %v223 = vstv %s222
        %v224 = vadd.s32 %v223, %v221
        %vm225 = vcmp.lt.s32.totalorder %v224, 128
        %v226 = vmul.f32 %v219, 0.5
        %v227 = vtanh.pop %v226
        %v228 = vmul.f32 %v227, 0.5
        %v229 = vadd.f32 %v228, 0.5
        %v230 = vmul.f32 %v229, 1.442695
        %v231 = vpow.pop %v230
        %v232 = vlaneseq
        %v233 = vshrl.u32 %v232, 7
        %v234 = vand.u32 %v233, 1
        %v235 = vld [vmem:[%s193] sm:$0x1]
        %v236 = vmul.u32 %v235, 2
        %v237 = vperm.slane %v236, 0
        %vm238 = vcmp.eq.s32.totalorder %v233, %v237
        %v239 = vsel %vm238, %v229, 0.0
        %v240 = vrot.slane %v239, 4
        %v241 = vadd.f32 %v239, %v240
        %v242 = vrot.slane %v241, 2
        %v243 = vadd.f32 %v241, %v242
        %v244 = vrot.slane %v243, 1
        %v245 = vadd.f32 %v243, %v244
        %vm246 = vcmp.eq.s32.totalorder %v234, 0
        %v247 = vsel %vm246, %v231, 0.0
        %v248 = vrot.slane %v247, 4
        %v249 = vadd.f32 %v247, %v248
        %v250 = vrot.slane %v249, 2
        %v251 = vadd.f32 %v249, %v250
        %v252 = vrot.slane %v251, 1
        %v253 = vadd.f32 %v251, %v252
        %v254 = vld [vmem:[%s193 + $0x1] sm:$0x1]
        %v255 = vmul.u32 %v254, 2
        %v256 = vadd.s32 %v255, 1
        %v257 = vperm.slane %v256, 0
        %vm258 = vcmp.eq.s32.totalorder %v233, %v257
        %v259 = vsel %vm258, %v229, 0.0
        %v260 = vrot.slane %v259, 4
        %v261 = vadd.f32 %v259, %v260
        %v262 = vrot.slane %v261, 2
        %v263 = vadd.f32 %v261, %v262
        %v264 = vrot.slane %v263, 1
        %v265 = vadd.f32 %v263, %v264
        %vm266 = vcmp.eq.s32.totalorder %v234, 1
        %v267 = vsel %vm266, %v231, 0.0
        %v268 = vrot.slane %v267, 4
        %v269 = vadd.f32 %v267, %v268
        %v270 = vrot.slane %v269, 2
        %v271 = vadd.f32 %v269, %v270
        %v272 = vrot.slane %v271, 1
        %v273 = vadd.f32 %v271, %v272
        %vm274 = vcmask 1040384
        %v275 = vsel %vm274, %v245, %v265
        %v276 = vsel %vm274, %v253, %v273
        %v277 = vlog2.pop %v276
        %v278 = vmul.f32 %v277, 0.6931472
        %v279 = vsub.f32 %v275, %v278
        %v280 = vmul.f32 %v279, 1.442695
        %v281 = vpow.pop %v280
        %v282 = vsub.f32 1.0, %v281
        %v283 = vlog2.pop %v282
        %v284 = vmul.f32 %v283, 0.6931472
        %v285 = vmul.f32 %v284, 0.2
        %v286 = vmul.f32 %v285, 1.442695
        %v287 = vpow.pop %v286
        %v288 = vsub.f32 0.0, %v287
        %v289 = vmul.f32 %v288, %v279
        %v290 = vsel %vm225, 1, 0
        %vm291 = vcmp.eq.s32.totalorder %v290, 1
        %v292 = vsel %vm291, %v289, 0.0
        %vm293 = vcmask 1041408
        %v294 = vsel %vm293, %v292, 0.0
        %295 = vadd.xlane.f32.xlu0 %v294
        %v296 = vpop.xlane.xlu0 %295
        %v297 = vrot.slane %v296, 4
        %v298 = vadd.f32 %v296, %v297
        %v299 = vrot.slane %v298, 2
        %v300 = vadd.f32 %v298, %v299
        %v301 = vrot.slane %v300, 1
        %v302 = vadd.f32 %v300, %v301
        %s303 = vtos %v302
        %v304 = vstv %s303
        %305 = vst [vmem:[%s218] sm:$0x1] %v304
        %s306 = sand.u32 %s100, 1
        %s307 = scalar_lea.sflag [#allocation4], %s306
        %s308 = sand.u32 %s100, 1
        %s309 = scalar_lea.vmem [#allocation7], %s308
        // Predicated region
        $region37: #{tpu_custom_call.1} parent=27 // pred_check
          %p310 = pneg %p110
        $region38: #{tpu_custom_call.1} parent=27 // pred_check_branch
          %312 = sbr.rel (%p310) target = $region40
        $region39: #{tpu_custom_call.1} parent=27 // pred_region
          %314 = vsyncadd %s307, 0
          %s315 = sadd.s32 %s27, %s26
          %s316 = scalar_lea.hbm %s2, %s315
          %s318 = sshll.u32 %s309, 4
          %s319 = int_to_ptr.vmem [resolvable:$true] %s318
          %s320 = sshll.u32 %s316, 4
          %s321 = int_to_ptr.hbm [resolvable:$true] %s320
          %323 = dma.vmem_to_hbm [thread:$0]  %s319, 16, %s321, %s307
        $region40: #{tpu_custom_call.1} parent=27 // pred_fallthru
          _
      $region28: #{tpu_custom_call.1} parent=5 // pred_fallthru
        _
      %p324 = scmp.le.s32.totalorder 2, %s17
      // Predicated region
      $region41: #{tpu_custom_call.1} parent=5 // pred_check
        %p325 = pneg %p324
      $region42: #{tpu_custom_call.1} parent=5 // pred_check_branch
        %327 = sbr.rel (%p325) target = $region44
      $region43: #{tpu_custom_call.1} parent=5 // pred_region
        %s328 = ssub.s32 %s17, 2
        // Predicated region
        $region45: #{tpu_custom_call.1} parent=43 // pred_check
          %p329 = pneg %p116
        $region46: #{tpu_custom_call.1} parent=43 // pred_check_branch
          %331 = sbr.rel (%p329) target = $region48
        $region47: #{tpu_custom_call.1} parent=43 // pred_region
          %s332 = sand.u32 %s101, 1
          %s333 = scalar_lea.sflag [#allocation4], %s332
          %s334 = sand.u32 %s101, 1
          %s335 = scalar_lea.vmem [#allocation7], %s334
          %337 = dma.done %s333, 16
        $region48: #{tpu_custom_call.1} parent=43 // pred_fallthru
          _
      $region44: #{tpu_custom_call.1} parent=5 // pred_fallthru
        _
    $region6: #{tpu_custom_call.1} parent=1 // loop_footer
      %s21 = sadd.s32 1, %s17
    $region7: #{tpu_custom_call.1} parent=1 // loop_footer_branch
      %16 = sbr.rel target = $region3
    $region8: #{tpu_custom_call.1} parent=1 // loop_exit
      _
    %338 = vsyncpa [#allocation3], 1
    %s339 = scalar_lea.sflag [#allocation3], 1
    %340 = vsyncpa %s339, 1
    %341 = vsyncpa [#allocation6], 1
    %s342 = scalar_lea.sflag [#allocation6], 1
    %343 = vsyncpa %s342, 1
    %344 = vsyncpa [#allocation4], 1
    %s345 = scalar_lea.sflag [#allocation4], 1
    %346 = vsyncpa %s345, 1

</llo_original>
